<compile_context>
chip_gen: v7x
topology: tpu7x:2x2x1
jax: 0.10.0
libtpu: 0.0.40
codegen_flags: <defaults>
</compile_context>

<pallas_src>
import functools

import numpy as np
import jax
import jax.numpy as jnp
from jax.experimental import pallas as pl
from jax.experimental.pallas import tpu as pltpu


def _round_up(x, m):
    return (x + m - 1) // m * m


# ---------------------------------------------------------------------------
# Kernels
# ---------------------------------------------------------------------------
def _eval_fused_kernel(x_ref, w1_ref, wfc_ref, scale_ref, shift_ref,
                       reduce_ref, bn_ref, fc_ref, *, compute_dtype):
    """Per B-tile: conv1x1 matmul -> BN (precomputed scale/shift) -> fc matmul."""
    x = x_ref[...].astype(compute_dtype)                       # f32 -> bf16 in-kernel
    reduce = jnp.dot(x, w1_ref[...], preferred_element_type=jnp.float32)
    reduce_ref[...] = reduce
    bn = reduce * scale_ref[...] + shift_ref[...]              # single FMA epilogue
    bn_ref[...] = bn
    fc_ref[...] = jnp.dot(bn.astype(compute_dtype), wfc_ref[...],
                          preferred_element_type=jnp.float32)


def _train_fused_kernel(x_ref, w1_ref, wfc_ref, gamma_ref, beta_ref,
                        reduce_ref, bn_ref, fc_ref, *, eps, batch, compute_dtype):
    """Whole batch resident: matmul -> single-pass batch stats -> BN -> fc."""
    x = x_ref[...].astype(compute_dtype)
    reduce = jnp.dot(x, w1_ref[...], preferred_element_type=jnp.float32)
    reduce_ref[...] = reduce
    inv_b = jnp.float32(1.0 / batch)
    s = jnp.sum(reduce, axis=0, keepdims=True)
    sq = jnp.sum(reduce * reduce, axis=0, keepdims=True)
    mean = s * inv_b
    var = jnp.maximum(sq * inv_b - mean * mean, 0.0)           # biased (train) variance
    scale = gamma_ref[...] * jax.lax.rsqrt(var + eps)
    shift = beta_ref[...] - mean * scale
    bn = reduce * scale + shift
    bn_ref[...] = bn
    fc_ref[...] = jnp.dot(bn.astype(compute_dtype), wfc_ref[...],
                          preferred_element_type=jnp.float32)


def _train_stats_kernel(x_ref, w1_ref, reduce_ref, sum_ref, sumsq_ref, *,
                        compute_dtype):
    """Tiled pass 1: reduce = x @ w1 per B-tile; accumulate global sum / sumsq."""
    @pl.when(pl.program_id(0) == 0)
    def _():
        sum_ref[...] = jnp.zeros_like(sum_ref)
        sumsq_ref[...] = jnp.zeros_like(sumsq_ref)

    x = x_ref[...].astype(compute_dtype)
    reduce = jnp.dot(x, w1_ref[...], preferred_element_type=jnp.float32)
    reduce_ref[...] = reduce
    sum_ref[...] = sum_ref[...] + jnp.sum(reduce, axis=0, keepdims=True)
    sumsq_ref[...] = sumsq_ref[...] + jnp.sum(reduce * reduce, axis=0, keepdims=True)


def _train_epilogue_kernel(reduce_ref, wfc_ref, scale_ref, shift_ref,
                           bn_ref, fc_ref, *, compute_dtype):
    """Tiled pass 2: BN with the global scale/shift, then fc matmul."""
    bn = reduce_ref[...] * scale_ref[...] + shift_ref[...]
    bn_ref[...] = bn
    fc_ref[...] = jnp.dot(bn.astype(compute_dtype), wfc_ref[...],
                          preferred_element_type=jnp.float32)


# ---------------------------------------------------------------------------
# Wrapper
# ---------------------------------------------------------------------------
def _pick_block_b(b_pad, feat_in, feat_out, num_classes, budget_bytes=12 * 2**20):
    """Largest 8-multiple row tile whose double-buffered streams fit the budget
    (conservative so it also fits v5e's 16 MiB scoped-VMEM default)."""
    per_row = 2 * 4 * (feat_in + 2 * feat_out + num_classes)          # f32, 2 buffers
    resident = 2 * 2 * (feat_in * feat_out + feat_out * num_classes)  # bf16 weights
    avail = max(budget_bytes - resident, 8 * per_row)
    bb = max(8, min(512, (avail // per_row) // 8 * 8))
    return int(min(bb, b_pad))


def refc_forward(x, params, *, eps=1e-5, training=True,
                 compute_dtype=jnp.bfloat16, block_b=None):
    """Returns (reduce, bn, fc) exactly like REFC.forward.

    x: (B, feat_in, 1, 1) or (B, feat_in), f32.
    params:
      w1  : (feat_in, feat_out)  = conv1.weight[:, :, 0, 0].T  (store as bf16)
      wfc : (feat_out, classes)  = fc.weight.T                 (store as bf16)
      gamma, beta, running_mean, running_var : (feat_out,) f32
    """
    B = x.shape[0]
    x2 = x.reshape(B, -1)                                  # f32 stays f32 into the kernel

    w1 = params["w1"]
    wfc = params["wfc"]
    if w1.dtype != compute_dtype:
        w1 = w1.astype(compute_dtype)
    if wfc.dtype != compute_dtype:
        wfc = wfc.astype(compute_dtype)
    feat_in, feat_out = w1.shape
    num_classes = wfc.shape[1]
    assert x2.shape[1] == feat_in, (x2.shape, w1.shape)

    f32 = jnp.float32
    gamma = params["gamma"].reshape(1, feat_out).astype(f32)
    beta = params["beta"].reshape(1, feat_out).astype(f32)

    vmem = pl.BlockSpec(memory_space=pltpu.MemorySpace.VMEM)
    flops = 2 * B * feat_out * (feat_in + num_classes)
    bytes_accessed = int(x2.size * 4 + w1.size * 2 + wfc.size * 2
                         + B * feat_out * 8 + B * num_classes * 4)
    cost = pl.CostEstimate(flops=flops, transcendentals=0,
                           bytes_accessed=bytes_accessed)

    b_pad8 = _round_up(B, 8)

    # ----------------------------------------------------------------- training
    if training:
        # TODO(synk): PyTorch BatchNorm1d also updates running_mean/running_var in
        # training mode; that module-state side effect is not a forward output and
        # is not reproduced here.
        whole_batch_ok = (block_b is None or block_b >= b_pad8)
        footprint = (b_pad8 * 4 * (feat_in + 2 * feat_out + num_classes)
                     + 2 * (feat_in * feat_out + feat_out * num_classes))
        if whole_batch_ok and footprint <= 12 * 2**20:
            # Small batch: single fused call, global batch stats in one pass.
            kernel = functools.partial(_train_fused_kernel, eps=float(eps),
                                       batch=B, compute_dtype=compute_dtype)
            reduce, bn, fc = pl.pallas_call(
                kernel,
                out_shape=(
                    jax.ShapeDtypeStruct((B, feat_out), f32),
                    jax.ShapeDtypeStruct((B, feat_out), f32),
                    jax.ShapeDtypeStruct((B, num_classes), f32),
                ),
                in_specs=[vmem] * 5,
                out_specs=(vmem, vmem, vmem),
                cost_estimate=cost,
            )(x2, w1, wfc, gamma, beta)
            return reduce, bn, fc

        # Large batch: two tiled passes so batch statistics stay global.
        bb = (_pick_block_b(b_pad8, feat_in, feat_out, num_classes)
              if block_b is None else _round_up(min(block_b, b_pad8), 8))
        b_pad = _round_up(B, bb)
        x2p = jnp.pad(x2, ((0, b_pad - B), (0, 0))) if b_pad != B else x2
        grid = (b_pad // bb,)

        # Pass 1: reduce = x @ w1, plus global sum / sum-of-squares accumulators
        # (zero-padded rows contribute 0 to both, so stats divide by true B).
        stats_kernel = functools.partial(_train_stats_kernel,
                                         compute_dtype=compute_dtype)
        reduce_p, s, sq = pl.pallas_call(
            stats_kernel,
            grid=grid,
            in_specs=[
                pl.BlockSpec((bb, feat_in), lambda i: (i, 0)),
                pl.BlockSpec((feat_in, feat_out), lambda i: (0, 0)),
            ],
            out_specs=(
                pl.BlockSpec((bb, feat_out), lambda i: (i, 0)),
                pl.BlockSpec((1, feat_out), lambda i: (0, 0)),
                pl.BlockSpec((1, feat_out), lambda i: (0, 0)),
            ),
            out_shape=(
                jax.ShapeDtypeStruct((b_pad, feat_out), f32),
                jax.ShapeDtypeStruct((1, feat_out), f32),
                jax.ShapeDtypeStruct((1, feat_out), f32),
            ),
            compiler_params=pltpu.CompilerParams(
                dimension_semantics=("arbitrary",)),
        )(x2p, w1)

        # Tiny (1, feat_out) math in plain JAX.
        mean = s / B
        var = jnp.maximum(sq / B - mean * mean, 0.0)
        scale = gamma * jax.lax.rsqrt(var + eps)
        shift = beta - mean * scale

        # Pass 2: BN + fc, tiled over B, parallel across cores.
        epi_kernel = functools.partial(_train_epilogue_kernel,
                                       compute_dtype=compute_dtype)
        bn_p, fc_p = pl.pallas_call(
            epi_kernel,
            grid=grid,
            in_specs=[
                pl.BlockSpec((bb, feat_out), lambda i: (i, 0)),
                pl.BlockSpec((feat_out, num_classes), lambda i: (0, 0)),
                pl.BlockSpec((1, feat_out), lambda i: (0, 0)),
                pl.BlockSpec((1, feat_out), lambda i: (0, 0)),
            ],
            out_specs=(
                pl.BlockSpec((bb, feat_out), lambda i: (i, 0)),
                pl.BlockSpec((bb, num_classes), lambda i: (i, 0)),
            ),
            out_shape=(
                jax.ShapeDtypeStruct((b_pad, feat_out), f32),
                jax.ShapeDtypeStruct((b_pad, num_classes), f32),
            ),
            compiler_params=pltpu.CompilerParams(
                dimension_semantics=("parallel",)),
        )(reduce_p, wfc, scale, shift)

        if b_pad != B:
            return reduce_p[:B], bn_p[:B], fc_p[:B]
        return reduce_p, bn_p, fc_p

    # --------------------------------------------------------------------- eval
    # Fold running stats + gamma/beta into a single scale/shift outside the kernel.
    rmean = params["running_mean"].reshape(1, feat_out).astype(f32)
    rvar = params["running_var"].reshape(1, feat_out).astype(f32)
    scale = gamma * jax.lax.rsqrt(rvar + eps)
    shift = beta - rmean * scale

    bb = (_pick_block_b(b_pad8, feat_in, feat_out, num_classes)
          if block_b is None else _round_up(min(block_b, b_pad8), 8))
    b_pad = _round_up(B, bb)
    x2p = jnp.pad(x2, ((0, b_pad - B), (0, 0))) if b_pad != B else x2
    grid = (b_pad // bb,)

    eval_kernel = functools.partial(_eval_fused_kernel, compute_dtype=compute_dtype)
    reduce_p, bn_p, fc_p = pl.pallas_call(
        eval_kernel,
        grid=grid,
        in_specs=[
            pl.BlockSpec((bb, feat_in), lambda i: (i, 0)),
            pl.BlockSpec((feat_in, feat_out), lambda i: (0, 0)),
            pl.BlockSpec((feat_out, num_classes), lambda i: (0, 0)),
            pl.BlockSpec((1, feat_out), lambda i: (0, 0)),
            pl.BlockSpec((1, feat_out), lambda i: (0, 0)),
        ],
        out_specs=(
            pl.BlockSpec((bb, feat_out), lambda i: (i, 0)),
            pl.BlockSpec((bb, feat_out), lambda i: (i, 0)),
            pl.BlockSpec((bb, num_classes), lambda i: (i, 0)),
        ),
        out_shape=(
            jax.ShapeDtypeStruct((b_pad, feat_out), f32),
            jax.ShapeDtypeStruct((b_pad, feat_out), f32),
            jax.ShapeDtypeStruct((b_pad, num_classes), f32),
        ),
        compiler_params=pltpu.CompilerParams(dimension_semantics=("parallel",)),
        cost_estimate=cost,
    )(x2p, w1, wfc, scale, shift)

    if b_pad != B:
        return reduce_p[:B], bn_p[:B], fc_p[:B]
    return reduce_p, bn_p, fc_p


# ---------------------------------------------------------------------------
# Pure-JAX reference with the same precision policy (bf16 matmul operands).
# ---------------------------------------------------------------------------
def refc_reference(x, params, *, eps=1e-5, training=True, compute_dtype=jnp.bfloat16):
    B = x.shape[0]
    x2 = x.reshape(B, -1).astype(compute_dtype)
    w1 = params["w1"].astype(compute_dtype)
    wfc = params["wfc"].astype(compute_dtype)

    reduce = jnp.dot(x2, w1, preferred_element_type=jnp.float32)
    gamma = params["gamma"][None].astype(jnp.float32)
    beta = params["beta"][None].astype(jnp.float32)
    if training:
        mean = jnp.mean(reduce, axis=0, keepdims=True)
        var = jnp.mean(jnp.square(reduce - mean), axis=0, keepdims=True)
    else:
        mean = params["running_mean"][None].astype(jnp.float32)
        var = params["running_var"][None].astype(jnp.float32)
    bn = (reduce - mean) * (gamma * jax.lax.rsqrt(var + eps)) + beta
    fc = jnp.dot(bn.astype(compute_dtype), wfc, preferred_element_type=jnp.float32)
    return reduce, bn, fc


if __name__ == "__main__":
    # Spatial size must be 1x1 (the module's own BatchNorm1d(feat_out) on the
    # flattened conv output requires it).  Feature dims are 128-multiples so the
    # lane axis is dense.  Weights are stored in bf16 (no per-call convert).
    B, feat_in, feat_out, num_classes = 32, 256, 128, 128

    key = jax.random.PRNGKey(0)
    kx, kw1, kg, kwfc = jax.random.split(key, 4)

    x = jax.random.normal(kx, (B, feat_in, 1, 1), jnp.float32)

    # conv1.weight: kaiming_normal_(fan_in), stored pre-transposed (feat_in, feat_out), bf16.
    w1 = (jax.random.normal(kw1, (feat_in, feat_out), jnp.float32)
          * np.sqrt(2.0 / feat_in)).astype(jnp.bfloat16)
    # bn1: weight ~ N(1, 0.02), bias = 0, running stats at init values.
    gamma = 1.0 + 0.02 * jax.random.normal(kg, (feat_out,), jnp.float32)
    beta = jnp.zeros((feat_out,), jnp.float32)
    running_mean = jnp.zeros((feat_out,), jnp.float32)
    running_var = jnp.ones((feat_out,), jnp.float32)
    # fc.weight: kaiming_normal_(fan_out), stored as (feat_out, num_classes) = fc.weight.T, bf16.
    wfc = (jax.random.normal(kwfc, (feat_out, num_classes), jnp.float32)
           * np.sqrt(2.0 / num_classes)).astype(jnp.bfloat16)

    params = dict(w1=w1, wfc=wfc, gamma=gamma, beta=beta,
                  running_mean=running_mean, running_var=running_var)

    configs = [
        dict(training=True),               # whole-batch fused training (in-kernel stats)
        dict(training=True, block_b=8),    # forced tiled two-pass training path
        dict(training=False),              # eval, single B tile
        dict(training=False, block_b=8),   # eval, B-tiled grid
    ]
    for cfg in configs:
        outs = jax.block_until_ready(refc_forward(x, params, **cfg))
        refs = jax.block_until_ready(refc_reference(x, params, training=cfg["training"]))
        assert outs[0].shape == (B, feat_out)
        assert outs[1].shape == (B, feat_out)
        assert outs[2].shape == (B, num_classes)
        for name, o, r in zip(("reduce", "bn", "fc"), outs, refs):
            np.testing.assert_allclose(np.asarray(o), np.asarray(r),
                                       rtol=1e-2, atol=1e-2,
                                       err_msg=f"{name} cfg={cfg}")

    print("KERNEL_OK")
</pallas_src>

<mosaic_0001>
module attributes {stable_mosaic.version = 11 : i64} {
  func.func @_train_fused_kernel(%arg0: memref<32x256xf32, #tpu.memory_space<vmem>>, %arg1: memref<256x128xbf16, #tpu.memory_space<vmem>>, %arg2: memref<128x128xbf16, #tpu.memory_space<vmem>>, %arg3: memref<1x128xf32, #tpu.memory_space<vmem>>, %arg4: memref<1x128xf32, #tpu.memory_space<vmem>>, %arg5: memref<32x128xf32, #tpu.memory_space<vmem>>, %arg6: memref<32x128xf32, #tpu.memory_space<vmem>>, %arg7: memref<32x128xf32, #tpu.memory_space<vmem>>) attributes {dimension_semantics = [], scalar_prefetch = 0 : i64, scratch_operands = 0 : i64, tpu.core_type = #tpu.core_type<tc>} {
    %c0 = arith.constant 0 : index
    %c0_0 = arith.constant 0 : index
    %0 = vector.load %arg0[%c0, %c0_0] : memref<32x256xf32, #tpu.memory_space<vmem>>, vector<32x256xf32>
    %1 = arith.truncf %0 : vector<32x256xf32> to vector<32x256xbf16>
    %c0_1 = arith.constant 0 : index
    %c0_2 = arith.constant 0 : index
    %2 = vector.load %arg1[%c0_1, %c0_2] : memref<256x128xbf16, #tpu.memory_space<vmem>>, vector<256x128xbf16>
    %cst = arith.constant dense<0.000000e+00> : vector<32x128xf32>
    %3 = tpu.matmul %1, %2, %cst {dimension_numbers = #tpu.dot_dimension_numbers<[1], [0], [0], [1], [0, 0, 1, 1], [], []>} : vector<32x256xbf16>, vector<256x128xbf16>, vector<32x128xf32> -> vector<32x128xf32>
    %c0_3 = arith.constant 0 : index
    %c0_4 = arith.constant 0 : index
    %4 = vector.load %arg5[%c0_3, %c0_4] : memref<32x128xf32, #tpu.memory_space<vmem>>, vector<32x128xf32>
    tpu.vector_store %arg5[%c0_3, %c0_4], %3 {strides = array<i32>} : memref<32x128xf32, #tpu.memory_space<vmem>>, vector<32x128xf32>,
    %cst_5 = arith.constant dense<0.000000e+00> : vector<128xf32>
    %5 = vector.multi_reduction <add>, %3, %cst_5 [0] : vector<32x128xf32> to vector<128xf32>
    %6 = vector.shape_cast %5 : vector<128xf32> to vector<1x128xf32>
    %7 = arith.mulf %3, %3 : vector<32x128xf32>
    %cst_6 = arith.constant dense<0.000000e+00> : vector<128xf32>
    %8 = vector.multi_reduction <add>, %7, %cst_6 [0] : vector<32x128xf32> to vector<128xf32>
    %9 = vector.shape_cast %8 : vector<128xf32> to vector<1x128xf32>
    %cst_7 = arith.constant 3.125000e-02 : f32
    %10 = vector.broadcast %cst_7 : f32 to vector<1x128xf32>
    %11 = arith.mulf %6, %10 : vector<1x128xf32>
    %cst_8 = arith.constant 3.125000e-02 : f32
    %12 = vector.broadcast %cst_8 : f32 to vector<1x128xf32>
    %13 = arith.mulf %9, %12 : vector<1x128xf32>
    %14 = arith.mulf %11, %11 : vector<1x128xf32>
    %15 = arith.subf %13, %14 : vector<1x128xf32>
    %cst_9 = arith.constant 0.000000e+00 : f32
    %16 = vector.broadcast %cst_9 : f32 to vector<1x128xf32>
    %17 = arith.maximumf %15, %16 : vector<1x128xf32>
    %c0_10 = arith.constant 0 : index
    %c0_11 = arith.constant 0 : index
    %18 = vector.load %arg3[%c0_10, %c0_11] : memref<1x128xf32, #tpu.memory_space<vmem>>, vector<1x128xf32>
    %cst_12 = arith.constant 9.99999974E-6 : f32
    %19 = vector.broadcast %cst_12 : f32 to vector<1x128xf32>
    %20 = arith.addf %17, %19 : vector<1x128xf32>
    %21 = math.rsqrt %20 : vector<1x128xf32>
    %22 = arith.mulf %18, %21 : vector<1x128xf32>
    %c0_13 = arith.constant 0 : index
    %c0_14 = arith.constant 0 : index
    %23 = vector.load %arg4[%c0_13, %c0_14] : memref<1x128xf32, #tpu.memory_space<vmem>>, vector<1x128xf32>
    %24 = arith.mulf %11, %22 : vector<1x128xf32>
    %25 = arith.subf %23, %24 : vector<1x128xf32>
    %26 = vector.broadcast %22 : vector<1x128xf32> to vector<32x128xf32>
    %27 = arith.mulf %3, %26 : vector<32x128xf32>
    %28 = vector.broadcast %25 : vector<1x128xf32> to vector<32x128xf32>
    %29 = arith.addf %27, %28 : vector<32x128xf32>
    %c0_15 = arith.constant 0 : index
    %c0_16 = arith.constant 0 : index
    %30 = vector.load %arg6[%c0_15, %c0_16] : memref<32x128xf32, #tpu.memory_space<vmem>>, vector<32x128xf32>
    tpu.vector_store %arg6[%c0_15, %c0_16], %29 {strides = array<i32>} : memref<32x128xf32, #tpu.memory_space<vmem>>, vector<32x128xf32>,
    %31 = arith.truncf %29 : vector<32x128xf32> to vector<32x128xbf16>
    %c0_17 = arith.constant 0 : index
    %c0_18 = arith.constant 0 : index
    %32 = vector.load %arg2[%c0_17, %c0_18] : memref<128x128xbf16, #tpu.memory_space<vmem>>, vector<128x128xbf16>
    %cst_19 = arith.constant dense<0.000000e+00> : vector<32x128xf32>
    %33 = tpu.matmul %31, %32, %cst_19 {dimension_numbers = #tpu.dot_dimension_numbers<[1], [0], [0], [1], [0, 0, 1, 1], [], []>} : vector<32x128xbf16>, vector<128x128xbf16>, vector<32x128xf32> -> vector<32x128xf32>
    %c0_20 = arith.constant 0 : index
    %c0_21 = arith.constant 0 : index
    %34 = vector.load %arg7[%c0_20, %c0_21] : memref<32x128xf32, #tpu.memory_space<vmem>>, vector<32x128xf32>
    tpu.vector_store %arg7[%c0_20, %c0_21], %33 {strides = array<i32>} : memref<32x128xf32, #tpu.memory_space<vmem>>, vector<32x128xf32>,
    return
  }
}

</mosaic_0001>

<llo_original>
// kernel: tpu_custom_call.1
$region0: #{tpu_custom_call.1}
  #allocation0 [shape = 'u32[]', space=smem, size = 0x4, offset = 0x4, fixed_abs, tag = 'smem constant byte address 0x4 - core index']
  #allocation1 [shape = 'u32[144,128]{1,0:T(1,128)}', space=vmem, size = 0x12000, scoped, tag = 'internal scratch']
  %s0 = inlined_call_operand.hbm [shape: f32[32,256], index: 0, kind: input, shape index: {}]
  %s1 = inlined_call_operand.hbm [shape: bf16[256,128], index: 1, kind: input, shape index: {}]
  %s2 = inlined_call_operand.hbm [shape: bf16[128,128], index: 2, kind: input, shape index: {}]
  %s3 = inlined_call_operand.vmem [shape: f32[1,128], index: 3, kind: input, shape index: {}]
  %s4 = inlined_call_operand.vmem [shape: f32[1,128], index: 4, kind: input, shape index: {}]
  %s5 = inlined_call_operand.hbm [shape: f32[32,128], index: 5, kind: output, shape index: {0}]
  %s6 = inlined_call_operand.hbm [shape: f32[32,128], index: 6, kind: output, shape index: {1}]
  %s7 = inlined_call_operand.hbm [shape: f32[32,128], index: 7, kind: output, shape index: {2}]
  %8 = xla_tuple %s5, %s6, %s7
  %s9 = sld [smem:[#allocation0]]
  $region58: #{tpu_custom_call.1} parent=0
    _
  %s11 = ssub.s32 1, %s9
  %s12 = scalar_select 0, %s11, %s9
  $region1: #{tpu_custom_call.1} parent=0
    #allocation2 [shape = 'u8[32768]{0}', space=vmem, size = 0x8000, scoped, tag = 'input window, operand 0, single buffered']
    #allocation3 [shape = 's32[1]{0}', space=sflag, size = 0x4, scoped, tag = 'scoped memory for tpu_custom_call.1']
    #allocation4 [shape = 's32[1]{0}', space=sflag, size = 0x4, scoped, tag = 'scoped memory for tpu_custom_call.1']
    #allocation5 [shape = 'u8[65536]{0}', space=vmem, size = 0x10000, scoped, tag = 'input window, operand 1, single buffered']
    #allocation6 [shape = 's32[1]{0}', space=sflag, size = 0x4, scoped, tag = 'scoped memory for tpu_custom_call.1']
    #allocation7 [shape = 'u8[32768]{0}', space=vmem, size = 0x8000, scoped, tag = 'input window, operand 2, single buffered']
    #allocation8 [shape = 'u8[16384]{0}', space=vmem, size = 0x4000, scoped, tag = 'output window, operand 0, single buffered']
    #allocation9 [shape = 'u8[16384]{0}', space=vmem, size = 0x4000, scoped, tag = 'output window, operand 1, single buffered']
    #allocation10 [shape = 's32[1]{0}', space=sflag, size = 0x4, scoped, tag = 'scoped memory for tpu_custom_call.1']
    #allocation11 [shape = 'u8[16384]{0}', space=vmem, size = 0x4000, scoped, tag = 'output window, operand 2, single buffered']
    %13 = vsyncpa [#allocation3], 0
    %14 = vsyncpa [#allocation6], 0
    %15 = vsyncpa [#allocation4], 0
    %16 = vsyncpa [#allocation10], 0
    // Predicated region
    $region2: #{tpu_custom_call.1} parent=1 // pred_check
      _
    $region3: #{tpu_custom_call.1} parent=1 // pred_check_branch
      %18 = sbr.rel (0) target = $region5
    $region4: #{tpu_custom_call.1} parent=1 // pred_region
      %s20 = ssub.s32 1024, 1024
      %21 = vsyncadd [#allocation3], %s20
      %s22 = sshll.u32 [#allocation2], 4
      %s23 = int_to_ptr.vmem [resolvable:$true] %s22
      %28 = dma.hbm_to_vmem [thread:$0]  %s0, 1024, %s23, [#allocation3], 256, 256, 16
    $region5: #{tpu_custom_call.1} parent=1 // pred_fallthru
      _
    // Predicated region
    $region6: #{tpu_custom_call.1} parent=1 // pred_check
      _
    $region7: #{tpu_custom_call.1} parent=1 // pred_check_branch
      %30 = sbr.rel (0) target = $region9
    $region8: #{tpu_custom_call.1} parent=1 // pred_region
      %s32 = ssub.s32 2048, 2048
      %33 = vsyncadd [#allocation6], %s32
      %s34 = sshll.u32 [#allocation5], 4
      %s35 = int_to_ptr.vmem [resolvable:$true] %s34
      %40 = dma.hbm_to_vmem [thread:$0]  %s1, 2048, %s35, [#allocation6], 64, 64, 4
    $region9: #{tpu_custom_call.1} parent=1 // pred_fallthru
      _
    // Predicated region
    $region10: #{tpu_custom_call.1} parent=1 // pred_check
      _
    $region11: #{tpu_custom_call.1} parent=1 // pred_check_branch
      %42 = sbr.rel (0) target = $region13
    $region12: #{tpu_custom_call.1} parent=1 // pred_region
      %s44 = ssub.s32 1024, 1024
      %45 = vsyncadd [#allocation6], %s44
      %s46 = sshll.u32 [#allocation7], 4
      %s47 = int_to_ptr.vmem [resolvable:$true] %s46
      %52 = dma.hbm_to_vmem [thread:$0]  %s2, 1024, %s47, [#allocation6], 64, 64, 4
    $region13: #{tpu_custom_call.1} parent=1 // pred_fallthru
      _
    // Predicated region
    $region14: #{tpu_custom_call.1} parent=1 // pred_check
      _
    $region15: #{tpu_custom_call.1} parent=1 // pred_check_branch
      %54 = sbr.rel (0) target = $region17
    $region16: #{tpu_custom_call.1} parent=1 // pred_region
      _
    $region17: #{tpu_custom_call.1} parent=1 // pred_fallthru
      _
    // Predicated region
    $region18: #{tpu_custom_call.1} parent=1 // pred_check
      _
    $region19: #{tpu_custom_call.1} parent=1 // pred_check_branch
      %56 = sbr.rel (0) target = $region21
    $region20: #{tpu_custom_call.1} parent=1 // pred_region
      _
    $region21: #{tpu_custom_call.1} parent=1 // pred_fallthru
      _
    // Predicated region
    $region22: #{tpu_custom_call.1} parent=1 // pred_check
      _
    $region23: #{tpu_custom_call.1} parent=1 // pred_check_branch
      %58 = sbr.rel (0) target = $region25
    $region24: #{tpu_custom_call.1} parent=1 // pred_region
      %59 = dma.done [#allocation3], 1024
    $region25: #{tpu_custom_call.1} parent=1 // pred_fallthru
      _
    // Predicated region
    $region26: #{tpu_custom_call.1} parent=1 // pred_check
      _
    $region27: #{tpu_custom_call.1} parent=1 // pred_check_branch
      %61 = sbr.rel (0) target = $region29
    $region28: #{tpu_custom_call.1} parent=1 // pred_region
      %62 = dma.done [#allocation6], 2048
    $region29: #{tpu_custom_call.1} parent=1 // pred_fallthru
      _
    // Predicated region
    $region30: #{tpu_custom_call.1} parent=1 // pred_check
      _
    $region31: #{tpu_custom_call.1} parent=1 // pred_check_branch
      %64 = sbr.rel (0) target = $region33
    $region32: #{tpu_custom_call.1} parent=1 // pred_region
      %65 = dma.done [#allocation6], 1024
    $region33: #{tpu_custom_call.1} parent=1 // pred_fallthru
      _
    %v67 = vld [vmem:[#allocation2] sm:$0xff]
    %v68 = vld [vmem:[#allocation2 + $0x8] sm:$0xff]
    %v69 = vld [vmem:[#allocation2 + $0x10] sm:$0xff]
    %v70 = vld [vmem:[#allocation2 + $0x18] sm:$0xff]
    %v71 = vld [vmem:[#allocation2 + $0x20] sm:$0xff]
    %v72 = vld [vmem:[#allocation2 + $0x28] sm:$0xff]
    %v73 = vld [vmem:[#allocation2 + $0x30] sm:$0xff]
    %v74 = vld [vmem:[#allocation2 + $0x38] sm:$0xff]
    %v75 = vpack.c.bf16 %v69, %v67
    %v76 = vpack.c.bf16 %v70, %v68
    %v77 = vpack.c.bf16 %v73, %v71
    %v78 = vpack.c.bf16 %v74, %v72
    %v79 = vld [vmem:[#allocation5] sm:$0xf]
    %v80 = vld [vmem:[#allocation5 + $0x4] sm:$0xf]
    %v81 = vld [vmem:[#allocation5 + $0x8] sm:$0xf]
    %v82 = vld [vmem:[#allocation5 + $0xc] sm:$0xf]
    %v83 = vld [vmem:[#allocation5 + $0x10] sm:$0xf]
    %v84 = vld [vmem:[#allocation5 + $0x14] sm:$0xf]
    %v85 = vld [vmem:[#allocation5 + $0x18] sm:$0xf]
    %v86 = vld [vmem:[#allocation5 + $0x1c] sm:$0xf]
    %v87 = vld [vmem:[#allocation5 + $0x20] sm:$0xf]
    %v88 = vld [vmem:[#allocation5 + $0x24] sm:$0xf]
    %v89 = vld [vmem:[#allocation5 + $0x28] sm:$0xf]
    %v90 = vld [vmem:[#allocation5 + $0x2c] sm:$0xf]
    %v91 = vld [vmem:[#allocation5 + $0x30] sm:$0xf]
    %v92 = vld [vmem:[#allocation5 + $0x34] sm:$0xf]
    %v93 = vld [vmem:[#allocation5 + $0x38] sm:$0xf]
    %v94 = vld [vmem:[#allocation5 + $0x3c] sm:$0xf]
    %v95 = vld [vmem:[#allocation5 + $0x40] sm:$0xf]
    %v96 = vld [vmem:[#allocation5 + $0x44] sm:$0xf]
    %v97 = vld [vmem:[#allocation5 + $0x48] sm:$0xf]
    %v98 = vld [vmem:[#allocation5 + $0x4c] sm:$0xf]
    %v99 = vld [vmem:[#allocation5 + $0x50] sm:$0xf]
    %v100 = vld [vmem:[#allocation5 + $0x54] sm:$0xf]
    %v101 = vld [vmem:[#allocation5 + $0x58] sm:$0xf]
    %v102 = vld [vmem:[#allocation5 + $0x5c] sm:$0xf]
    %v103 = vld [vmem:[#allocation5 + $0x60] sm:$0xf]
    %v104 = vld [vmem:[#allocation5 + $0x64] sm:$0xf]
    %v105 = vld [vmem:[#allocation5 + $0x68] sm:$0xf]
    %v106 = vld [vmem:[#allocation5 + $0x6c] sm:$0xf]
    %v107 = vld [vmem:[#allocation5 + $0x70] sm:$0xf]
    %v108 = vld [vmem:[#allocation5 + $0x74] sm:$0xf]
    %v109 = vld [vmem:[#allocation5 + $0x78] sm:$0xf]
    %v110 = vld [vmem:[#allocation5 + $0x7c] sm:$0xf]
    %v143 = vunpack.c.l.b16 %v79
    %v144 = vunpack.c.l.b16 %v80
    %v145 = vunpack.c.l.b16 %v81
    %v146 = vunpack.c.l.b16 %v82
    %v147 = vunpack.c.l.b16 %v83
    %v148 = vunpack.c.l.b16 %v84
    %v149 = vunpack.c.l.b16 %v85
    %v150 = vunpack.c.l.b16 %v86
    %v151 = vunpack.c.l.b16 %v87
    %v152 = vunpack.c.l.b16 %v88
    %v153 = vunpack.c.l.b16 %v89
    %v154 = vunpack.c.l.b16 %v90
    %v155 = vunpack.c.l.b16 %v91
    %v156 = vunpack.c.l.b16 %v92
    %v157 = vunpack.c.l.b16 %v93
    %v158 = vunpack.c.l.b16 %v94
    %v159 = vunpack.c.l.b16 %v95
    %v160 = vunpack.c.l.b16 %v96
    %v161 = vunpack.c.l.b16 %v97
    %v162 = vunpack.c.l.b16 %v98
    %v163 = vunpack.c.l.b16 %v99
    %v164 = vunpack.c.l.b16 %v100
    %v165 = vunpack.c.l.b16 %v101
    %v166 = vunpack.c.l.b16 %v102
    %v167 = vunpack.c.l.b16 %v103
    %v168 = vunpack.c.l.b16 %v104
    %v169 = vunpack.c.l.b16 %v105
    %v170 = vunpack.c.l.b16 %v106
    %v171 = vunpack.c.l.b16 %v107
    %v172 = vunpack.c.l.b16 %v108
    %v173 = vunpack.c.l.b16 %v109
    %v174 = vunpack.c.l.b16 %v110
    %v175 = vpack.c.b16 %v144, %v143
    %v176 = vpack.c.b16 %v146, %v145
    %v177 = vpack.c.b16 %v148, %v147
    %v178 = vpack.c.b16 %v150, %v149
    %v179 = vpack.c.b16 %v152, %v151
    %v180 = vpack.c.b16 %v154, %v153
    %v181 = vpack.c.b16 %v156, %v155
    %v182 = vpack.c.b16 %v158, %v157
    %v183 = vpack.c.b16 %v160, %v159
    %v184 = vpack.c.b16 %v162, %v161
    %v185 = vpack.c.b16 %v164, %v163
    %v186 = vpack.c.b16 %v166, %v165
    %v187 = vpack.c.b16 %v168, %v167
    %v188 = vpack.c.b16 %v170, %v169
    %v189 = vpack.c.b16 %v172, %v171
    %v190 = vpack.c.b16 %v174, %v173
    %207 = vmatprep.subr.bf16.mxu0 0
    %208 = vmatpush1.bf16.msra.mxu0 %v175
    %209 = vmatprep.subr.bf16.mxu0 0
    %210 = vmatpush1.bf16.msra.mxu0 %v176
    %211 = vmatprep.subr.bf16.mxu0 0
    %212 = vmatpush1.bf16.msra.mxu0 %v177
    %213 = vmatprep.subr.bf16.mxu0 0
    %214 = vmatpush1.bf16.msra.mxu0 %v178
    %215 = vmatprep.subr.bf16.mxu0 0
    %216 = vmatpush1.bf16.msra.mxu0 %v179
    %217 = vmatprep.subr.bf16.mxu0 0
    %218 = vmatpush1.bf16.msra.mxu0 %v180
    %219 = vmatprep.subr.bf16.mxu0 0
    %220 = vmatpush1.bf16.msra.mxu0 %v181
    %221 = vmatprep.subr.bf16.mxu0 0
    %222 = vmatpush1.bf16.msra.mxu0 %v182
    %223 = vmatprep.subr.bf16.mxu0 0
    %224 = vmatpush1.bf16.msra.mxu0 %v183
    %225 = vmatprep.subr.bf16.mxu0 0
    %226 = vmatpush1.bf16.msra.mxu0 %v184
    %227 = vmatprep.subr.bf16.mxu0 0
    %228 = vmatpush1.bf16.msra.mxu0 %v185
    %229 = vmatprep.subr.bf16.mxu0 0
    %230 = vmatpush1.bf16.msra.mxu0 %v186
    %231 = vmatprep.subr.bf16.mxu0 0
    %232 = vmatpush1.bf16.msra.mxu0 %v187
    %233 = vmatprep.subr.bf16.mxu0 0
    %234 = vmatpush1.bf16.msra.mxu0 %v188
    %235 = vmatprep.subr.bf16.mxu0 0
    %236 = vmatpush1.bf16.msra.mxu0 %v189
    %237 = vmatprep.subr.bf16.mxu0 0
    %238 = vmatpush1.bf16.msra.mxu0 %v190
    %239 = vmatprep.mubr.bf16.mxu0 %v76
    %240 = vmatmul.mubr.bf16.gmra.mrb[0].mxu0 %v75
    %v241 = vpop.f32.mrb[0].mxu0
    %v242 = vadd.f32 0.0, %v241
    %v243 = vpop.f32.mrb[0].mxu0
    %v244 = vpop.f32.mrb[0].mxu0
    %v245 = vadd.f32 0.0, %v244
    %v246 = vpop.f32.mrb[0].mxu0
    %247 = vmatprep.mubr.bf16.mxu0 %v78
    %248 = vmatmul.mubr.bf16.gmra.mrb[0].mxu0 %v77
    %v249 = vpop.f32.mrb[0].mxu0
    %v250 = vadd.f32 0.0, %v249
    %v251 = vpop.f32.mrb[0].mxu0
    %v252 = vpop.f32.mrb[0].mxu0
    %v253 = vadd.f32 0.0, %v252
    %v254 = vpop.f32.mrb[0].mxu0
    %255 = vdwg.mxu0
    %256 = vst [vmem:[#allocation8] sm:$0xff] %v242
    %257 = vst [vmem:[#allocation8 + $0x8] sm:$0xff] %v245
    %258 = vst [vmem:[#allocation8 + $0x10] sm:$0xff] %v250
    %259 = vst [vmem:[#allocation8 + $0x18] sm:$0xff] %v253
    %v260 = vadd.f32 %v242, %v245
    %v261 = vadd.f32 %v260, %v250
    %v262 = vadd.f32 %v261, %v253
    %v263 = vrot.slane %v262, 4
    %v264 = vadd.f32 %v262, %v263
    %v265 = vrot.slane %v264, 2
    %v266 = vadd.f32 %v264, %v265
    %v267 = vrot.slane %v266, 1
    %v268 = vadd.f32 %v266, %v267
    %v269 = vmul.f32 %v242, %v242
    %v270 = vmul.f32 %v245, %v245
    %v271 = vmul.f32 %v250, %v250
    %v272 = vmul.f32 %v253, %v253
    %v273 = vadd.f32 %v269, %v270
    %v274 = vadd.f32 %v273, %v271
    %v275 = vadd.f32 %v274, %v272
    %v276 = vrot.slane %v275, 4
    %v277 = vadd.f32 %v275, %v276
    %v278 = vrot.slane %v277, 2
    %v279 = vadd.f32 %v277, %v278
    %v280 = vrot.slane %v279, 1
    %v281 = vadd.f32 %v279, %v280
    %v282 = vmul.f32 %v268, 0.03125
    %v283 = vmul.f32 %v281, 0.03125
    %v284 = vmul.f32 %v282, %v282
    %v285 = vsub.f32 %v283, %v284
    %v286 = vmax.f32 %v285, 0.0
    %v287 = vld [vmem:[%s3] sm:$0x1]
    %v288 = vadd.f32 %v286, 1e-05
    %v289 = vrsqrt.pop %v288
    %v290 = vmul.f32 %v287, %v289
    %v291 = vld [vmem:[%s4] sm:$0x1]
    %v292 = vmul.f32 %v282, %v290
    %v293 = vsub.f32 %v291, %v292
    %v295 = vlaneseq
    %v296 = vshrl.u32 %v295, 7
    %v297 = vsub.s32 0, %v296
    %v298 = vrot.slane %v290, %v297
    %v300 = vmul.f32 %v242, %v298
    %v301 = vmul.f32 %v245, %v298
    %v302 = vmul.f32 %v250, %v298
    %v303 = vmul.f32 %v253, %v298
    %v305 = vlaneseq
    %v306 = vshrl.u32 %v305, 7
    %v307 = vsub.s32 0, %v306
    %v308 = vrot.slane %v293, %v307
    %v310 = vadd.f32 %v300, %v308
    %v311 = vadd.f32 %v301, %v308
    %v312 = vadd.f32 %v302, %v308
    %v313 = vadd.f32 %v303, %v308
    %314 = vst [vmem:[#allocation9] sm:$0xff] %v310
    %315 = vst [vmem:[#allocation9 + $0x8] sm:$0xff] %v311
    %316 = vst [vmem:[#allocation9 + $0x10] sm:$0xff] %v312
    %317 = vst [vmem:[#allocation9 + $0x18] sm:$0xff] %v313
    %v318 = vpack.c.bf16 %v311, %v310
    %v319 = vpack.c.bf16 %v313, %v312
    %v320 = vld [vmem:[#allocation7] sm:$0xf]
    %v321 = vld [vmem:[#allocation7 + $0x4] sm:$0xf]
    %v322 = vld [vmem:[#allocation7 + $0x8] sm:$0xf]
    %v323 = vld [vmem:[#allocation7 + $0xc] sm:$0xf]
    %v324 = vld [vmem:[#allocation7 + $0x10] sm:$0xf]
    %v325 = vld [vmem:[#allocation7 + $0x14] sm:$0xf]
    %v326 = vld [vmem:[#allocation7 + $0x18] sm:$0xf]
    %v327 = vld [vmem:[#allocation7 + $0x1c] sm:$0xf]
    %v328 = vld [vmem:[#allocation7 + $0x20] sm:$0xf]
    %v329 = vld [vmem:[#allocation7 + $0x24] sm:$0xf]
    %v330 = vld [vmem:[#allocation7 + $0x28] sm:$0xf]
    %v331 = vld [vmem:[#allocation7 + $0x2c] sm:$0xf]
    %v332 = vld [vmem:[#allocation7 + $0x30] sm:$0xf]
    %v333 = vld [vmem:[#allocation7 + $0x34] sm:$0xf]
    %v334 = vld [vmem:[#allocation7 + $0x38] sm:$0xf]
    %v335 = vld [vmem:[#allocation7 + $0x3c] sm:$0xf]
    %v352 = vunpack.c.l.b16 %v320
    %v353 = vunpack.c.l.b16 %v321
    %v354 = vunpack.c.l.b16 %v322
    %v355 = vunpack.c.l.b16 %v323
    %v356 = vunpack.c.l.b16 %v324
    %v357 = vunpack.c.l.b16 %v325
    %v358 = vunpack.c.l.b16 %v326
    %v359 = vunpack.c.l.b16 %v327
    %v360 = vunpack.c.l.b16 %v328
    %v361 = vunpack.c.l.b16 %v329
    %v362 = vunpack.c.l.b16 %v330
    %v363 = vunpack.c.l.b16 %v331
    %v364 = vunpack.c.l.b16 %v332
    %v365 = vunpack.c.l.b16 %v333
    %v366 = vunpack.c.l.b16 %v334
    %v367 = vunpack.c.l.b16 %v335
    %v368 = vpack.c.b16 %v353, %v352
    %v369 = vpack.c.b16 %v355, %v354
    %v370 = vpack.c.b16 %v357, %v356
    %v371 = vpack.c.b16 %v359, %v358
    %v372 = vpack.c.b16 %v361, %v360
    %v373 = vpack.c.b16 %v363, %v362
    %v374 = vpack.c.b16 %v365, %v364
    %v375 = vpack.c.b16 %v367, %v366
    %384 = vmatprep.subr.bf16.mxu0 0
    %385 = vmatpush1.bf16.msra.mxu0 %v368
    %386 = vmatprep.subr.bf16.mxu0 0
    %387 = vmatpush1.bf16.msra.mxu0 %v369
    %388 = vmatprep.subr.bf16.mxu0 0
    %389 = vmatpush1.bf16.msra.mxu0 %v370
    %390 = vmatprep.subr.bf16.mxu0 0
    %391 = vmatpush1.bf16.msra.mxu0 %v371
    %392 = vmatprep.subr.bf16.mxu0 0
    %393 = vmatpush1.bf16.msra.mxu0 %v372
    %394 = vmatprep.subr.bf16.mxu0 0
    %395 = vmatpush1.bf16.msra.mxu0 %v373
    %396 = vmatprep.subr.bf16.mxu0 0
    %397 = vmatpush1.bf16.msra.mxu0 %v374
    %398 = vmatprep.subr.bf16.mxu0 0
    %399 = vmatpush1.bf16.msra.mxu0 %v375
    %400 = vmatprep.subr.bf16.mxu0 0
    %401 = vmatpush1.bf16.msra.mxu0 0
    %402 = vmatprep.subr.bf16.mxu0 0
    %403 = vmatpush1.bf16.msra.mxu0 0
    %404 = vmatprep.subr.bf16.mxu0 0
    %405 = vmatpush1.bf16.msra.mxu0 0
    %406 = vmatprep.subr.bf16.mxu0 0
    %407 = vmatpush1.bf16.msra.mxu0 0
    %408 = vmatprep.subr.bf16.mxu0 0
    %409 = vmatpush1.bf16.msra.mxu0 0
    %410 = vmatprep.subr.bf16.mxu0 0
    %411 = vmatpush1.bf16.msra.mxu0 0
    %412 = vmatprep.subr.bf16.mxu0 0
    %413 = vmatpush1.bf16.msra.mxu0 0
    %414 = vmatprep.subr.bf16.mxu0 0
    %415 = vmatpush1.bf16.msra.mxu0 0
    %416 = vmatprep.mubr.bf16.mxu0 0
    %417 = vmatmul.mubr.bf16.gmra.mrb[0].mxu0 %v318
    %v418 = vpop.f32.mrb[0].mxu0
    %v419 = vadd.f32 0.0, %v418
    %v420 = vpop.f32.mrb[0].mxu0
    %v421 = vpop.f32.mrb[0].mxu0
    %v422 = vadd.f32 0.0, %v421
    %v423 = vpop.f32.mrb[0].mxu0
    %424 = vmatprep.mubr.bf16.mxu0 0
    %425 = vmatmul.mubr.bf16.gmra.mrb[0].mxu0 %v319
    %v426 = vpop.f32.mrb[0].mxu0
    %v427 = vadd.f32 0.0, %v426
    %v428 = vpop.f32.mrb[0].mxu0
    %v429 = vpop.f32.mrb[0].mxu0
    %v430 = vadd.f32 0.0, %v429
    %v431 = vpop.f32.mrb[0].mxu0
    %432 = vdwg.mxu0
    %433 = vst [vmem:[#allocation11] sm:$0xff] %v419
    %434 = vst [vmem:[#allocation11 + $0x8] sm:$0xff] %v422
    %435 = vst [vmem:[#allocation11 + $0x10] sm:$0xff] %v427
    %436 = vst [vmem:[#allocation11 + $0x18] sm:$0xff] %v430
    // Predicated region
    $region34: #{tpu_custom_call.1} parent=1 // pred_check
      _
    $region35: #{tpu_custom_call.1} parent=1 // pred_check_branch
      %438 = sbr.rel (0) target = $region37
    $region36: #{tpu_custom_call.1} parent=1 // pred_region
      %s440 = ssub.s32 512, 512
      %441 = vsyncadd [#allocation4], %s440
      %s442 = sshll.u32 [#allocation8], 4
      %s443 = int_to_ptr.vmem [resolvable:$true] %s442
      %448 = dma.vmem_to_hbm [thread:$0]  %s443, 512, %s5, [#allocation4], 128, 128, 8
    $region37: #{tpu_custom_call.1} parent=1 // pred_fallthru
      _
    // Predicated region
    $region38: #{tpu_custom_call.1} parent=1 // pred_check
      _
    $region39: #{tpu_custom_call.1} parent=1 // pred_check_branch
      %450 = sbr.rel (0) target = $region41
    $region40: #{tpu_custom_call.1} parent=1 // pred_region
      %s452 = ssub.s32 512, 512
      %453 = vsyncadd [#allocation10], %s452
      %s454 = sshll.u32 [#allocation9], 4
      %s455 = int_to_ptr.vmem [resolvable:$true] %s454
      %460 = dma.vmem_to_hbm [thread:$0]  %s455, 512, %s6, [#allocation10], 128, 128, 8
    $region41: #{tpu_custom_call.1} parent=1 // pred_fallthru
      _
    // Predicated region
    $region42: #{tpu_custom_call.1} parent=1 // pred_check
      _
    $region43: #{tpu_custom_call.1} parent=1 // pred_check_branch
      %462 = sbr.rel (0) target = $region45
    $region44: #{tpu_custom_call.1} parent=1 // pred_region
      %s464 = ssub.s32 512, 512
      %465 = vsyncadd [#allocation10], %s464
      %s466 = sshll.u32 [#allocation11], 4
      %s467 = int_to_ptr.vmem [resolvable:$true] %s466
      %472 = dma.vmem_to_hbm [thread:$0]  %s467, 512, %s7, [#allocation10], 128, 128, 8
    $region45: #{tpu_custom_call.1} parent=1 // pred_fallthru
      _
    // Predicated region
    $region46: #{tpu_custom_call.1} parent=1 // pred_check
      _
    $region47: #{tpu_custom_call.1} parent=1 // pred_check_branch
      %474 = sbr.rel (0) target = $region49
    $region48: #{tpu_custom_call.1} parent=1 // pred_region
      %475 = dma.done [#allocation4], 512
    $region49: #{tpu_custom_call.1} parent=1 // pred_fallthru
      _
    // Predicated region
    $region50: #{tpu_custom_call.1} parent=1 // pred_check
      _
    $region51: #{tpu_custom_call.1} parent=1 // pred_check_branch
      %477 = sbr.rel (0) target = $region53
    $region52: #{tpu_custom_call.1} parent=1 // pred_region
      %478 = dma.done [#allocation10], 512
    $region53: #{tpu_custom_call.1} parent=1 // pred_fallthru
      _
    // Predicated region
    $region54: #{tpu_custom_call.1} parent=1 // pred_check
      _
    $region55: #{tpu_custom_call.1} parent=1 // pred_check_branch
      %480 = sbr.rel (0) target = $region57
    $region56: #{tpu_custom_call.1} parent=1 // pred_region
      %481 = dma.done [#allocation10], 512
    $region57: #{tpu_custom_call.1} parent=1 // pred_fallthru
      _
    %482 = vsyncpa [#allocation3], 1
    %483 = vsyncpa [#allocation6], 1
    %484 = vsyncpa [#allocation4], 1
    %485 = vsyncpa [#allocation10], 1

</llo_original>
